<compile_context>
chip_gen: v5e
topology: v5e:2x2
jax: 0.10.0
libtpu: 0.0.40
codegen_flags: <defaults>
</compile_context>

<pallas_src>
import math
import functools

import jax
import jax.numpy as jnp
from jax.experimental import pallas as pl
from jax.experimental.pallas import tpu as pltpu


def _elu(x):
    # F.elu(alpha=1.0) in f32.  exp(min(x, 0)) avoids the inf-on-positive-branch
    # computation (the where masks it anyway) while keeping guaranteed lowering.
    return jnp.where(x > 0, x, jnp.exp(jnp.minimum(x, 0.0)) - 1.0)


def value_net_kernel(x_ref, w1_ref, b1_ref, w2_ref, b2_ref, w3_ref, b3_ref, o_ref):
    # Layer 1: bf16 MXU matmul, f32 accumulate, f32 bias + ELU (VPU/EUP).
    h1 = jnp.dot(x_ref[...], w1_ref[...], preferred_element_type=jnp.float32)
    h1 = _elu(h1 + b1_ref[...])
    # Layer 2: cast activation to bf16 for the MXU, accumulate in f32.
    h2 = jnp.dot(h1.astype(jnp.bfloat16), w2_ref[...],
                 preferred_element_type=jnp.float32)
    h2 = _elu(h2 + b2_ref[...])
    # Layer 3 (N=1): VPU multiply by the w3 row, transpose (XLU) and reduce over
    # the sublane axis so the per-row values land lane-dense in a (1, tb) row.
    prod = h2 * w3_ref[...]                                   # (tb, H) * (1, H)
    out_row = jnp.sum(prod.T, axis=0, keepdims=True)          # (1, tb)
    o_ref[...] = out_row + b3_ref[0]                          # scalar bias (SMEM)


def _round_up(x, m):
    return ((x + m - 1) // m) * m


@functools.partial(jax.jit, static_argnames=("batch_tile",))
def value_network_forward(state, params, *, batch_tile=512):
    """state: (B, state_dim) f32 -> (B, 1) f32."""
    w1, b1, w2, b2, w3, b3 = params
    B, S = state.shape
    H = w1.shape[1]

    # Lane-dense batch tile (multiple of 128), capped at the padded batch size.
    tb = _round_up(max(int(batch_tile), 128), 128)
    tb = min(tb, _round_up(B, 128))
    Bp = _round_up(B, tb)
    num_tiles = Bp // tb

    if Bp != B:
        state = jnp.pad(state, ((0, Bp - B), (0, 0)))

    # bf16 operands for the matmuls; everything element-wise stays f32.
    x_bf = state.astype(jnp.bfloat16)
    w1_bf = w1.astype(jnp.bfloat16)
    w2_bf = w2.astype(jnp.bfloat16)
    w3_f32 = w3.astype(jnp.float32)
    b3_f32 = b3.astype(jnp.float32).reshape((1,))

    cost = pl.CostEstimate(
        flops=2 * Bp * (S * H + H * H + H),
        transcendentals=2 * Bp * H,
        bytes_accessed=(x_bf.size * 2 + w1_bf.size * 2 + w2_bf.size * 2
                        + (b1.size + b2.size + w3_f32.size + 1) * 4 + Bp * 4),
    )

    out_row = pl.pallas_call(
        value_net_kernel,
        out_shape=jax.ShapeDtypeStruct((1, Bp), jnp.float32),
        grid_spec=pltpu.PrefetchScalarGridSpec(
            num_scalar_prefetch=0,
            grid=(num_tiles,),
            in_specs=[
                pl.BlockSpec((tb, S), lambda i: (i, 0)),            # state tile
                pl.BlockSpec((S, H), lambda i: (0, 0)),             # W1 (resident)
                pl.BlockSpec((1, H), lambda i: (0, 0)),             # b1
                pl.BlockSpec((H, H), lambda i: (0, 0)),             # W2 (resident)
                pl.BlockSpec((1, H), lambda i: (0, 0)),             # b2
                pl.BlockSpec((1, H), lambda i: (0, 0)),             # w3 row
                pl.BlockSpec(memory_space=pltpu.MemorySpace.SMEM),  # b3 scalar
            ],
            out_specs=pl.BlockSpec((1, tb), lambda i: (0, i)),      # lane-dense out
        ),
        compiler_params=pltpu.CompilerParams(
            dimension_semantics=("parallel",),
            vmem_limit_bytes=64 * 1024 * 1024),
        cost_estimate=cost,
    )(x_bf, w1_bf, b1, w2_bf, b2, w3_f32, b3_f32)

    # (1, Bp) lane-dense row -> (B, 1)
    return out_row[0, :B][:, None]


def xavier_uniform(key, shape, fan_in, fan_out, gain):
    # Matches torch.nn.init.xavier_uniform_: U(-a, a), a = gain*sqrt(6/(fi+fo)).
    a = gain * math.sqrt(6.0 / (fan_in + fan_out))
    return jax.random.uniform(key, shape, jnp.float32, minval=-a, maxval=a)


def init_params(key, state_dim, hidden_dim):
    k1, k2, k3 = jax.random.split(key, 3)
    gain = 0.5
    w1 = xavier_uniform(k1, (state_dim, hidden_dim), state_dim, hidden_dim, gain)
    b1 = jnp.zeros((1, hidden_dim), jnp.float32)
    w2 = xavier_uniform(k2, (hidden_dim, hidden_dim), hidden_dim, hidden_dim, gain)
    b2 = jnp.zeros((1, hidden_dim), jnp.float32)
    # Layer-3 weight kept as a lane-dense (1, H) row (PyTorch layout).
    w3 = xavier_uniform(k3, (1, hidden_dim), hidden_dim, 1, gain)
    b3 = jnp.zeros((1,), jnp.float32)
    return (w1, b1, w2, b2, w3, b3)


def reference_forward_f32(state, params):
    w1, b1, w2, b2, w3, b3 = params
    h1 = _elu(state @ w1 + b1)
    h2 = _elu(h1 @ w2 + b2)
    return jnp.sum(h2 * w3, axis=-1, keepdims=True) + b3


def reference_forward_bf16(state, params):
    # Mirrors the kernel numerics: bf16 matmul operands, f32 accumulation.
    w1, b1, w2, b2, w3, b3 = params
    x = state.astype(jnp.bfloat16)
    h1 = _elu(jnp.dot(x, w1.astype(jnp.bfloat16),
                      preferred_element_type=jnp.float32) + b1)
    h2 = _elu(jnp.dot(h1.astype(jnp.bfloat16), w2.astype(jnp.bfloat16),
                      preferred_element_type=jnp.float32) + b2)
    return jnp.sum(h2 * w3, axis=-1, keepdims=True) + b3


if __name__ == "__main__":
    key = jax.random.PRNGKey(0)
    k_params, k_state = jax.random.split(key)

    batch, state_dim, hidden_dim = 200, 16, 32
    params = init_params(k_params, state_dim, hidden_dim)
    state = jax.random.normal(k_state, (batch, state_dim), jnp.float32)

    # batch_tile=128 -> padded batch 256, grid of 2 "parallel" steps.
    out = value_network_forward(state, params, batch_tile=128)
    out = jax.block_until_ready(out)
    assert out.shape == (batch, 1)

    ref_bf16 = reference_forward_bf16(state, params)
    ref_f32 = reference_forward_f32(state, params)
    assert jnp.allclose(out, ref_bf16, atol=1e-3, rtol=1e-3), "mismatch vs bf16 reference"
    assert jnp.allclose(out, ref_f32, atol=1e-1, rtol=0.0), "mismatch vs f32 reference"

    print("KERNEL_OK")
</pallas_src>

<mosaic_0001>
module attributes {stable_mosaic.version = 11 : i64} {
  func.func @value_net_kernel(%arg0: i32, %arg1: memref<128x16xbf16, #tpu.memory_space<vmem>>, %arg2: memref<16x32xbf16, #tpu.memory_space<vmem>>, %arg3: memref<1x32xf32, #tpu.memory_space<vmem>>, %arg4: memref<32x32xbf16, #tpu.memory_space<vmem>>, %arg5: memref<1x32xf32, #tpu.memory_space<vmem>>, %arg6: memref<1x32xf32, #tpu.memory_space<vmem>>, %arg7: memref<1xf32, #tpu.memory_space<smem>>, %arg8: memref<1x128xf32, #tpu.memory_space<vmem>>) attributes {dimension_semantics = [#tpu.dimension_semantics<parallel>], iteration_bounds = array<i64: 2>, scalar_prefetch = 0 : i64, scratch_operands = 0 : i64, tpu.core_type = #tpu.core_type<tc>, window_params = [{transform_indices = @transform_0, window_bounds = array<i64: 128, 16>}, {pipeline_mode = #tpu.pipeline_mode<synchronous>, transform_indices = @transform_1, window_bounds = array<i64: 16, 32>}, {pipeline_mode = #tpu.pipeline_mode<synchronous>, transform_indices = @transform_2, window_bounds = array<i64: 1, 32>}, {pipeline_mode = #tpu.pipeline_mode<synchronous>, transform_indices = @transform_3, window_bounds = array<i64: 32, 32>}, {pipeline_mode = #tpu.pipeline_mode<synchronous>, transform_indices = @transform_4, window_bounds = array<i64: 1, 32>}, {pipeline_mode = #tpu.pipeline_mode<synchronous>, transform_indices = @transform_5, window_bounds = array<i64: 1, 32>}, {transform_indices = @transform_6, window_bounds = array<i64: 1>}, {transform_indices = @transform_7, window_bounds = array<i64: 1, 128>}]} {
    %c0 = arith.constant 0 : index
    %c0_0 = arith.constant 0 : index
    %0 = vector.load %arg1[%c0, %c0_0] : memref<128x16xbf16, #tpu.memory_space<vmem>>, vector<128x16xbf16>
    %c0_1 = arith.constant 0 : index
    %c0_2 = arith.constant 0 : index
    %1 = vector.load %arg2[%c0_1, %c0_2] : memref<16x32xbf16, #tpu.memory_space<vmem>>, vector<16x32xbf16>
    %cst = arith.constant dense<0.000000e+00> : vector<128x32xf32>
    %2 = tpu.matmul %0, %1, %cst {dimension_numbers = #tpu.dot_dimension_numbers<[1], [0], [0], [1], [0, 0, 1, 1], [], []>} : vector<128x16xbf16>, vector<16x32xbf16>, vector<128x32xf32> -> vector<128x32xf32>
    %c0_3 = arith.constant 0 : index
    %c0_4 = arith.constant 0 : index
    %3 = vector.load %arg3[%c0_3, %c0_4] : memref<1x32xf32, #tpu.memory_space<vmem>>, vector<1x32xf32>
    %4 = vector.broadcast %3 : vector<1x32xf32> to vector<128x32xf32>
    %5 = arith.addf %2, %4 : vector<128x32xf32>
    %cst_5 = arith.constant 0.000000e+00 : f32
    %6 = vector.broadcast %cst_5 : f32 to vector<128x32xf32>
    %7 = arith.cmpf ogt, %5, %6 : vector<128x32xf32>
    %cst_6 = arith.constant 0.000000e+00 : f32
    %8 = vector.broadcast %cst_6 : f32 to vector<128x32xf32>
    %9 = arith.minimumf %5, %8 : vector<128x32xf32>
    %10 = math.exp %9 : vector<128x32xf32>
    %cst_7 = arith.constant 1.000000e+00 : f32
    %11 = vector.broadcast %cst_7 : f32 to vector<128x32xf32>
    %12 = arith.subf %10, %11 : vector<128x32xf32>
    %13 = arith.select %7, %5, %12 : vector<128x32xi1>, vector<128x32xf32>
    %14 = arith.truncf %13 : vector<128x32xf32> to vector<128x32xbf16>
    %c0_8 = arith.constant 0 : index
    %c0_9 = arith.constant 0 : index
    %15 = vector.load %arg4[%c0_8, %c0_9] : memref<32x32xbf16, #tpu.memory_space<vmem>>, vector<32x32xbf16>
    %cst_10 = arith.constant dense<0.000000e+00> : vector<128x32xf32>
    %16 = tpu.matmul %14, %15, %cst_10 {dimension_numbers = #tpu.dot_dimension_numbers<[1], [0], [0], [1], [0, 0, 1, 1], [], []>} : vector<128x32xbf16>, vector<32x32xbf16>, vector<128x32xf32> -> vector<128x32xf32>
    %c0_11 = arith.constant 0 : index
    %c0_12 = arith.constant 0 : index
    %17 = vector.load %arg5[%c0_11, %c0_12] : memref<1x32xf32, #tpu.memory_space<vmem>>, vector<1x32xf32>
    %18 = vector.broadcast %17 : vector<1x32xf32> to vector<128x32xf32>
    %19 = arith.addf %16, %18 : vector<128x32xf32>
    %cst_13 = arith.constant 0.000000e+00 : f32
    %20 = vector.broadcast %cst_13 : f32 to vector<128x32xf32>
    %21 = arith.cmpf ogt, %19, %20 : vector<128x32xf32>
    %cst_14 = arith.constant 0.000000e+00 : f32
    %22 = vector.broadcast %cst_14 : f32 to vector<128x32xf32>
    %23 = arith.minimumf %19, %22 : vector<128x32xf32>
    %24 = math.exp %23 : vector<128x32xf32>
    %cst_15 = arith.constant 1.000000e+00 : f32
    %25 = vector.broadcast %cst_15 : f32 to vector<128x32xf32>
    %26 = arith.subf %24, %25 : vector<128x32xf32>
    %27 = arith.select %21, %19, %26 : vector<128x32xi1>, vector<128x32xf32>
    %c0_16 = arith.constant 0 : index
    %c0_17 = arith.constant 0 : index
    %28 = vector.load %arg6[%c0_16, %c0_17] : memref<1x32xf32, #tpu.memory_space<vmem>>, vector<1x32xf32>
    %29 = vector.broadcast %28 : vector<1x32xf32> to vector<128x32xf32>
    %30 = arith.mulf %27, %29 : vector<128x32xf32>
    %31 = tpu.transpose %30, [1, 0] : vector<128x32xf32> -> vector<32x128xf32>
    %cst_18 = arith.constant dense<0.000000e+00> : vector<128xf32>
    %32 = vector.multi_reduction <add>, %31, %cst_18 [0] : vector<32x128xf32> to vector<128xf32>
    %33 = vector.shape_cast %32 : vector<128xf32> to vector<1x128xf32>
    %c0_19 = arith.constant 0 : index
    %34 = memref.load %arg7[%c0_19] : memref<1xf32, #tpu.memory_space<smem>>
    %35 = vector.broadcast %34 : f32 to vector<1x128xf32>
    %36 = arith.addf %33, %35 : vector<1x128xf32>
    %c0_20 = arith.constant 0 : index
    %c0_21 = arith.constant 0 : index
    %37 = vector.load %arg8[%c0_20, %c0_21] : memref<1x128xf32, #tpu.memory_space<vmem>>, vector<1x128xf32>
    tpu.vector_store %arg8[%c0_20, %c0_21], %36 {strides = array<i32>} : memref<1x128xf32, #tpu.memory_space<vmem>>, vector<1x128xf32>,
    return
  }
  func.func @transform_0(%arg0: i32) -> (i32, i32) {
    %c0_i32 = arith.constant 0 : i32
    %c0_i32_0 = arith.constant 0 : i32
    return %arg0, %c0_i32 : i32, i32
  }
  func.func @transform_1(%arg0: i32) -> (i32, i32) {
    %c0_i32 = arith.constant 0 : i32
    %c0_i32_0 = arith.constant 0 : i32
    %c0_i32_1 = arith.constant 0 : i32
    return %c0_i32, %c0_i32_0 : i32, i32
  }
  func.func @transform_2(%arg0: i32) -> (i32, i32) {
    %c0_i32 = arith.constant 0 : i32
    %c0_i32_0 = arith.constant 0 : i32
    %c0_i32_1 = arith.constant 0 : i32
    return %c0_i32, %c0_i32_0 : i32, i32
  }
  func.func @transform_3(%arg0: i32) -> (i32, i32) {
    %c0_i32 = arith.constant 0 : i32
    %c0_i32_0 = arith.constant 0 : i32
    %c0_i32_1 = arith.constant 0 : i32
    return %c0_i32, %c0_i32_0 : i32, i32
  }
  func.func @transform_4(%arg0: i32) -> (i32, i32) {
    %c0_i32 = arith.constant 0 : i32
    %c0_i32_0 = arith.constant 0 : i32
    %c0_i32_1 = arith.constant 0 : i32
    return %c0_i32, %c0_i32_0 : i32, i32
  }
  func.func @transform_5(%arg0: i32) -> (i32, i32) {
    %c0_i32 = arith.constant 0 : i32
    %c0_i32_0 = arith.constant 0 : i32
    %c0_i32_1 = arith.constant 0 : i32
    return %c0_i32, %c0_i32_0 : i32, i32
  }
  func.func @transform_6(%arg0: i32) -> i32 {
    %c0_i32 = arith.constant 0 : i32
    %c0_i32_0 = arith.constant 0 : i32
    return %c0_i32 : i32
  }
  func.func @transform_7(%arg0: i32) -> (i32, i32) {
    %c0_i32 = arith.constant 0 : i32
    %c0_i32_0 = arith.constant 0 : i32
    return %c0_i32, %arg0 : i32, i32
  }
}

</mosaic_0001>

<llo_original>
// kernel: value_network_forward.1
$region0: #{value_network_forward.1}
  #allocation0 [shape = 'u32[]', space=smem, size = 0x4, offset = 0x4, fixed_abs, tag = 'smem constant byte address 0x4 - core index']
  #allocation1 [shape = 'u32[72,128]{1,0:T(1,128)}', space=vmem, size = 0x9000, scoped, tag = 'internal scratch']
  #allocation2 [shape = 'f32[1]{0:T(128)S(6)}', space=smem, size = 0x200, scoped, tag = 'scoped memory for value_network_forward.1']
  %s0 = inlined_call_operand.vmem [shape: bf16[256,16], index: 0, kind: input, shape index: {}]
  %s1 = inlined_call_operand.vmem [shape: bf16[16,32], index: 1, kind: input, shape index: {}]
  %s2 = inlined_call_operand.vmem [shape: f32[1,32], index: 2, kind: input, shape index: {}]
  %s3 = inlined_call_operand.vmem [shape: bf16[32,32], index: 3, kind: input, shape index: {}]
  %s4 = inlined_call_operand.vmem [shape: f32[1,32], index: 4, kind: input, shape index: {}]
  %s5 = inlined_call_operand.vmem [shape: f32[1,32], index: 5, kind: input, shape index: {}]
  %s6 = inlined_call_operand.<no memory space> [shape: f32[1], index: 6, kind: input, shape index: {}]
  %s7 = inlined_call_operand.vmem [shape: f32[1,256], index: 7, kind: output, shape index: {}]
  %s8 = sld [smem:[#allocation0]]
  $region61: #{value_network_forward.1} parent=0
    _
  %s10 = ssub.s32 1, %s8
  %s11 = scalar_select 0, %s10, %s8
  %12 = sst [smem:[#allocation2]] %s6
  loop: start=0, step=1, limit=4
  $region2: #{value_network_forward.1} parent=0 // loop_pre_header
    _
  $region3: #{value_network_forward.1} parent=0 // loop_header
    %s14 = sphi 0, %s18
    %p15 = scmp.ge.s32.totalorder %s14, 4
    %s24 = sphi 0, %s26
    %s27 = sphi 0, %s24
    %s28 = sphi 0, %s27
    %s44 = sphi 0, %s28
    %s48 = sphi 0, %s48
    %s50 = sphi 0, %s48
    %s51 = sphi 0, %s50
    %s65 = sphi 0, %s51
    %s69 = sphi 0, %s69
    %s71 = sphi 0, %s69
    %s72 = sphi 0, %s71
    %s86 = sphi 0, %s72
    %s90 = sphi 0, %s90
    %s92 = sphi 0, %s90
    %s93 = sphi 0, %s92
    %s107 = sphi 0, %s93
    %s111 = sphi 0, %s111
    %s113 = sphi 0, %s111
    %s114 = sphi 0, %s113
    %s128 = sphi 0, %s114
    %s132 = sphi 0, %s132
    %s134 = sphi 0, %s132
    %s135 = sphi 0, %s134
    %s149 = sphi 0, %s135
    %s153 = sphi 0, %s153
    %s155 = sphi 0, %s153
    %s156 = sphi 0, %s155
    %s170 = sphi 0, %s156
    %s176 = sphi 0, %s178
    %s179 = sphi 0, %s176
    %s180 = sphi 0, %s179
    %s196 = sphi 0, %s180
  $region4: #{value_network_forward.1} parent=0 // loop_header_branch
    %17 = sbr.rel (%p15) target = $region8
  $region5: #{value_network_forward.1} parent=0 // loop_body
    %s19 = ssub.s32 %s14, 1
    %s20 = ssub.s32 %s14, 2
    %s21 = sadd.s32 %s14, 1
    %s22 = ssub.s32 %s14, %s21
    %p23 = scmp.eq.s32.totalorder %s22, 0
    %s25 = sadd.s32 %s24, 1
    %s26 = scalar_select %p23, %s24, %s25
    %p29 = pneg %p23
    %p30 = scmp.eq.s32.totalorder %s14, 1
    %p31 = por %p29, %p30
    %p32 = scmp.ne.s32.totalorder %s24, %s27
    %p33 = scmp.eq.s32.totalorder %s14, 0
    %p34 = por %p32, %p33
    %p35 = scmp.ne.s32.totalorder %s24, %s27
    %p36 = scmp.eq.s32.totalorder %s19, 1
    %p37 = por %p35, %p36
    %p38 = scmp.ne.s32.totalorder %s27, %s28
    %p39 = scmp.eq.s32.totalorder %s19, 0
    %p40 = por %p38, %p39
    %p41 = scmp.ne.s32.totalorder %s27, %s28
    %p42 = scmp.eq.s32.totalorder %s20, 1
    %p43 = por %p41, %p42
    %p45 = scmp.ne.s32.totalorder %s28, %s44
    %p46 = scmp.eq.s32.totalorder %s20, 0
    %p47 = por %p45, %p46
    %s49 = sadd.s32 %s48, 1
    %p52 = scmp.eq.s32.totalorder %s14, 1
    %p53 = scmp.ne.s32.totalorder %s48, %s50
    %p54 = scmp.eq.s32.totalorder %s14, 0
    %p55 = por %p53, %p54
    %p56 = scmp.ne.s32.totalorder %s48, %s50
    %p57 = scmp.eq.s32.totalorder %s19, 1
    %p58 = por %p56, %p57
    %p59 = scmp.ne.s32.totalorder %s50, %s51
    %p60 = scmp.eq.s32.totalorder %s19, 0
    %p61 = por %p59, %p60
    %p62 = scmp.ne.s32.totalorder %s50, %s51
    %p63 = scmp.eq.s32.totalorder %s20, 1
    %p64 = por %p62, %p63
    %p66 = scmp.ne.s32.totalorder %s51, %s65
    %p67 = scmp.eq.s32.totalorder %s20, 0
    %p68 = por %p66, %p67
    %s70 = sadd.s32 %s69, 1
    %p73 = scmp.eq.s32.totalorder %s14, 1
    %p74 = scmp.ne.s32.totalorder %s69, %s71
    %p75 = scmp.eq.s32.totalorder %s14, 0
    %p76 = por %p74, %p75
    %p77 = scmp.ne.s32.totalorder %s69, %s71
    %p78 = scmp.eq.s32.totalorder %s19, 1
    %p79 = por %p77, %p78
    %p80 = scmp.ne.s32.totalorder %s71, %s72
    %p81 = scmp.eq.s32.totalorder %s19, 0
    %p82 = por %p80, %p81
    %p83 = scmp.ne.s32.totalorder %s71, %s72
    %p84 = scmp.eq.s32.totalorder %s20, 1
    %p85 = por %p83, %p84
    %p87 = scmp.ne.s32.totalorder %s72, %s86
    %p88 = scmp.eq.s32.totalorder %s20, 0
    %p89 = por %p87, %p88
    %s91 = sadd.s32 %s90, 1
    %p94 = scmp.eq.s32.totalorder %s14, 1
    %p95 = scmp.ne.s32.totalorder %s90, %s92
    %p96 = scmp.eq.s32.totalorder %s14, 0
    %p97 = por %p95, %p96
    %p98 = scmp.ne.s32.totalorder %s90, %s92
    %p99 = scmp.eq.s32.totalorder %s19, 1
    %p100 = por %p98, %p99
    %p101 = scmp.ne.s32.totalorder %s92, %s93
    %p102 = scmp.eq.s32.totalorder %s19, 0
    %p103 = por %p101, %p102
    %p104 = scmp.ne.s32.totalorder %s92, %s93
    %p105 = scmp.eq.s32.totalorder %s20, 1
    %p106 = por %p104, %p105
    %p108 = scmp.ne.s32.totalorder %s93, %s107
    %p109 = scmp.eq.s32.totalorder %s20, 0
    %p110 = por %p108, %p109
    %s112 = sadd.s32 %s111, 1
    %p115 = scmp.eq.s32.totalorder %s14, 1
    %p116 = scmp.ne.s32.totalorder %s111, %s113
    %p117 = scmp.eq.s32.totalorder %s14, 0
    %p118 = por %p116, %p117
    %p119 = scmp.ne.s32.totalorder %s111, %s113
    %p120 = scmp.eq.s32.totalorder %s19, 1
    %p121 = por %p119, %p120
    %p122 = scmp.ne.s32.totalorder %s113, %s114
    %p123 = scmp.eq.s32.totalorder %s19, 0
    %p124 = por %p122, %p123
    %p125 = scmp.ne.s32.totalorder %s113, %s114
    %p126 = scmp.eq.s32.totalorder %s20, 1
    %p127 = por %p125, %p126
    %p129 = scmp.ne.s32.totalorder %s114, %s128
    %p130 = scmp.eq.s32.totalorder %s20, 0
    %p131 = por %p129, %p130
    %s133 = sadd.s32 %s132, 1
    %p136 = scmp.eq.s32.totalorder %s14, 1
    %p137 = scmp.ne.s32.totalorder %s132, %s134
    %p138 = scmp.eq.s32.totalorder %s14, 0
    %p139 = por %p137, %p138
    %p140 = scmp.ne.s32.totalorder %s132, %s134
    %p141 = scmp.eq.s32.totalorder %s19, 1
    %p142 = por %p140, %p141
    %p143 = scmp.ne.s32.totalorder %s134, %s135
    %p144 = scmp.eq.s32.totalorder %s19, 0
    %p145 = por %p143, %p144
    %p146 = scmp.ne.s32.totalorder %s134, %s135
    %p147 = scmp.eq.s32.totalorder %s20, 1
    %p148 = por %p146, %p147
    %p150 = scmp.ne.s32.totalorder %s135, %s149
    %p151 = scmp.eq.s32.totalorder %s20, 0
    %p152 = por %p150, %p151
    %s154 = sadd.s32 %s153, 1
    %p157 = scmp.eq.s32.totalorder %s14, 1
    %p158 = scmp.ne.s32.totalorder %s153, %s155
    %p159 = scmp.eq.s32.totalorder %s14, 0
    %p160 = por %p158, %p159
    %p161 = scmp.ne.s32.totalorder %s153, %s155
    %p162 = scmp.eq.s32.totalorder %s19, 1
    %p163 = por %p161, %p162
    %p164 = scmp.ne.s32.totalorder %s155, %s156
    %p165 = scmp.eq.s32.totalorder %s19, 0
    %p166 = por %p164, %p165
    %p167 = scmp.ne.s32.totalorder %s155, %s156
    %p168 = scmp.eq.s32.totalorder %s20, 1
    %p169 = por %p167, %p168
    %p171 = scmp.ne.s32.totalorder %s156, %s170
    %p172 = scmp.eq.s32.totalorder %s20, 0
    %p173 = por %p171, %p172
    %s174 = ssub.s32 %s14, %s21
    %p175 = scmp.eq.s32.totalorder %s174, 0
    %s177 = sadd.s32 %s176, 1
    %s178 = scalar_select %p175, %s176, %s177
    %p181 = pneg %p175
    %p182 = scmp.eq.s32.totalorder %s14, 1
    %p183 = por %p181, %p182
    %p184 = scmp.ne.s32.totalorder %s176, %s179
    %p185 = scmp.eq.s32.totalorder %s14, 0
    %p186 = por %p184, %p185
    %p187 = scmp.ne.s32.totalorder %s176, %s179
    %p188 = scmp.eq.s32.totalorder %s19, 1
    %p189 = por %p187, %p188
    %p190 = scmp.ne.s32.totalorder %s179, %s180
    %p191 = scmp.eq.s32.totalorder %s19, 0
    %p192 = por %p190, %p191
    %p193 = scmp.ne.s32.totalorder %s179, %s180
    %p194 = scmp.eq.s32.totalorder %s20, 1
    %p195 = por %p193, %p194
    %p197 = scmp.ne.s32.totalorder %s180, %s196
    %p198 = scmp.eq.s32.totalorder %s20, 0
    %p199 = por %p197, %p198
    %p200 = scmp.le.s32.totalorder 1, %s14
    %p201 = scmp.lt.s32.totalorder %s14, 3
    %p202 = pnand %p200, %p201
    %p203 = pneg %p202
    // Predicated region
    $region9: #{value_network_forward.1} parent=5 // pred_check
      _
    $region10: #{value_network_forward.1} parent=5 // pred_check_branch
      %205 = sbr.rel (%p202) target = $region12
    $region11: #{value_network_forward.1} parent=5 // pred_region
      %s206 = ssub.s32 %s14, 1
      // Predicated region
      $region13: #{value_network_forward.1} parent=11 // pred_check
        %p207 = pneg %p61
      $region14: #{value_network_forward.1} parent=11 // pred_check_branch
        %209 = sbr.rel (%p207) target = $region16
      $region15: #{value_network_forward.1} parent=11 // pred_region
        _
      $region16: #{value_network_forward.1} parent=11 // pred_fallthru
        _
      // Predicated region
      $region17: #{value_network_forward.1} parent=11 // pred_check
        %p210 = pneg %p82
      $region18: #{value_network_forward.1} parent=11 // pred_check_branch
        %212 = sbr.rel (%p210) target = $region20
      $region19: #{value_network_forward.1} parent=11 // pred_region
        _
      $region20: #{value_network_forward.1} parent=11 // pred_fallthru
        _
      // Predicated region
      $region21: #{value_network_forward.1} parent=11 // pred_check
        %p213 = pneg %p103
      $region22: #{value_network_forward.1} parent=11 // pred_check_branch
        %215 = sbr.rel (%p213) target = $region24
      $region23: #{value_network_forward.1} parent=11 // pred_region
        _
      $region24: #{value_network_forward.1} parent=11 // pred_fallthru
        _
      // Predicated region
      $region25: #{value_network_forward.1} parent=11 // pred_check
        %p216 = pneg %p124
      $region26: #{value_network_forward.1} parent=11 // pred_check_branch
        %218 = sbr.rel (%p216) target = $region28
      $region27: #{value_network_forward.1} parent=11 // pred_region
        _
      $region28: #{value_network_forward.1} parent=11 // pred_fallthru
        _
      // Predicated region
      $region29: #{value_network_forward.1} parent=11 // pred_check
        %p219 = pneg %p145
      $region30: #{value_network_forward.1} parent=11 // pred_check_branch
        %221 = sbr.rel (%p219) target = $region32
      $region31: #{value_network_forward.1} parent=11 // pred_region
        _
      $region32: #{value_network_forward.1} parent=11 // pred_fallthru
        _
      // Predicated region
      $region33: #{value_network_forward.1} parent=11 // pred_check
        %p222 = pneg %p166
      $region34: #{value_network_forward.1} parent=11 // pred_check_branch
        %224 = sbr.rel (%p222) target = $region36
      $region35: #{value_network_forward.1} parent=11 // pred_region
        _
      $region36: #{value_network_forward.1} parent=11 // pred_fallthru
        _
    $region12: #{value_network_forward.1} parent=5 // pred_fallthru
      _
    %p225 = scmp.lt.s32.totalorder %s14, 2
    // Predicated region
    $region37: #{value_network_forward.1} parent=5 // pred_check
      %p226 = pneg %p225
    $region38: #{value_network_forward.1} parent=5 // pred_check_branch
      %228 = sbr.rel (%p226) target = $region40
    $region39: #{value_network_forward.1} parent=5 // pred_region
      // Predicated region
      $region41: #{value_network_forward.1} parent=39 // pred_check
        %p229 = pneg %p34
      $region42: #{value_network_forward.1} parent=39 // pred_check_branch
        %231 = sbr.rel (%p229) target = $region44
      $region43: #{value_network_forward.1} parent=39 // pred_region
        %s232 = smul.u32 16, %s14
        %p233 = scmp.lt.s32.totalorder %s232, 31
        %s234 = scalar_select %p233, %s232, 31
        %s235 = smul.addr %s234, 4
        %s236 = scalar_lea.vmem %s0, %s235
        %s237 = smul.u32 16, %s14
      $region44: #{value_network_forward.1} parent=39 // pred_fallthru
        _
    $region40: #{value_network_forward.1} parent=5 // pred_fallthru
      _
    %p238 = scmp.le.s32.totalorder 1, %s14
    %p239 = scmp.lt.s32.totalorder %s14, 3
    %p240 = pnand %p238, %p239
    %p241 = pneg %p240
    // Predicated region
    $region45: #{value_network_forward.1} parent=5 // pred_check
      _
    $region46: #{value_network_forward.1} parent=5 // pred_check_branch
      %243 = sbr.rel (%p240) target = $region48
    $region47: #{value_network_forward.1} parent=5 // pred_region
      %s244 = ssub.s32 %s14, 1
      %s245 = smul.u32 16, %s19
      %p246 = scmp.lt.s32.totalorder %s245, 31
      %s247 = scalar_select %p246, %s245, 31
      %s248 = smul.addr %s247, 4
      %s249 = scalar_lea.vmem %s0, %s248
      %p250 = pneg %p40
      %p251 = pneg %p37
      %p252 = pneg %p61
      %p253 = pneg %p58
      %p254 = pneg %p82
      %p255 = pneg %p79
      %p256 = pneg %p103
      %p257 = pneg %p100
      %p258 = pneg %p124
      %p259 = pneg %p121
      %p260 = pneg %p145
      %p261 = pneg %p142
      %p262 = pneg %p166
      %p263 = pneg %p163
      %p264 = pneg %p192
      %p265 = pneg %p189
      %p266 = scmp.lt.s32.totalorder %s19, 1
      %s267 = scalar_select %p266, %s19, 1
      %s268 = scalar_lea.vmem %s7, %s267
      %s269 = smul.u32 16, %s19
      %p270 = scmp.lt.s32.totalorder %s269, 31
      %s271 = scalar_select %p270, %s269, 31
      %s272 = smul.addr %s271, 4
      %s273 = scalar_lea.vmem %s0, %s272
      %s274 = smul.u32 16, %s19
      %p275 = scmp.lt.s32.totalorder %s19, 1
      %s276 = scalar_select %p275, %s19, 1
      %s277 = scalar_lea.vmem %s7, %s276
      %v279 = vld [vmem:[%s273] sm:$0xf]
      %v280 = vld [vmem:[%s273 + $0x4] sm:$0xf]
      %v281 = vld [vmem:[%s273 + $0x8] sm:$0xf]
      %v282 = vld [vmem:[%s273 + $0xc] sm:$0xf]
      %v283 = vld [vmem:[%s273 + $0x10] sm:$0xf]
      %v284 = vld [vmem:[%s273 + $0x14] sm:$0xf]
      %v285 = vld [vmem:[%s273 + $0x18] sm:$0xf]
      %v286 = vld [vmem:[%s273 + $0x1c] sm:$0xf]
      %v287 = vld [vmem:[%s273 + $0x20] sm:$0xf]
      %v288 = vld [vmem:[%s273 + $0x24] sm:$0xf]
      %v289 = vld [vmem:[%s273 + $0x28] sm:$0xf]
      %v290 = vld [vmem:[%s273 + $0x2c] sm:$0xf]
      %v291 = vld [vmem:[%s273 + $0x30] sm:$0xf]
      %v292 = vld [vmem:[%s273 + $0x34] sm:$0xf]
      %v293 = vld [vmem:[%s273 + $0x38] sm:$0xf]
      %v294 = vld [vmem:[%s273 + $0x3c] sm:$0xf]
      %v295 = vld [vmem:[%s1] sm:$0xf]
      %v296 = vld [vmem:[%s1 + $0x4] sm:$0xf]
      %v297 = vld [vmem:[%s2] sm:$0x1]
      %v299 = vperm.slane %v297, 0
      %v317 = vunpack.c.l.b16 %v279
      %v318 = vunpack.c.l.b16 %v280
      %v319 = vunpack.c.l.b16 %v281
      %v320 = vunpack.c.l.b16 %v282
      %v321 = vunpack.c.l.b16 %v283
      %v322 = vunpack.c.l.b16 %v284
      %v323 = vunpack.c.l.b16 %v285
      %v324 = vunpack.c.l.b16 %v286
      %v325 = vunpack.c.l.b16 %v287
      %v326 = vunpack.c.l.b16 %v288
      %v327 = vunpack.c.l.b16 %v289
      %v328 = vunpack.c.l.b16 %v290
      %v329 = vunpack.c.l.b16 %v291
      %v330 = vunpack.c.l.b16 %v292
      %v331 = vunpack.c.l.b16 %v293
      %v332 = vunpack.c.l.b16 %v294
      %v333 = vpack.c.b16 %v318, %v317
      %v334 = vpack.c.b16 %v320, %v319
      %v335 = vpack.c.b16 %v322, %v321
      %v336 = vpack.c.b16 %v324, %v323
      %v337 = vpack.c.b16 %v326, %v325
      %v338 = vpack.c.b16 %v328, %v327
      %v339 = vpack.c.b16 %v330, %v329
      %v340 = vpack.c.b16 %v332, %v331
      %v343 = vunpack.c.l.b16 %v295
      %v344 = vunpack.c.l.b16 %v296
      %v345 = vpack.c.b16 %v344, %v343
      %vm347 = vcmask 130048
      %v349 = vsel %vm347, %v333, 0
      %v352 = vsel %vm347, %v334, 0
      %v355 = vsel %vm347, %v335, 0
      %v358 = vsel %vm347, %v336, 0
      %v361 = vsel %vm347, %v337, 0
      %v364 = vsel %vm347, %v338, 0
      %v367 = vsel %vm347, %v339, 0
      %v370 = vsel %vm347, %v340, 0
      %372 = vmatpush.bf16.msra.mxu0 0
      %373 = vmatpush.bf16.msra.mxu0 0
      %374 = vmatpush.bf16.msra.mxu0 0
      %375 = vmatpush.bf16.msra.mxu0 0
      %376 = vmatpush.bf16.msra.mxu0 0
      %377 = vmatpush.bf16.msra.mxu0 0
      %378 = vmatpush.bf16.msra.mxu0 0
      %379 = vmatpush.bf16.msra.mxu0 %v345
      %380 = vmatmul.bf16.gmra.mxu0 %v349
      %v381 = vpop.f32.mrf.mxu0
      %v382 = vadd.f32 %v299, %v381
      %v383 = vpop.f32.mrf.mxu0
      %v384 = vadd.f32 %v299, %v383
      %385 = vmatmul.bf16.gmra.mxu0 %v352
      %v386 = vpop.f32.mrf.mxu0
      %v387 = vadd.f32 %v299, %v386
      %v388 = vpop.f32.mrf.mxu0
      %v389 = vadd.f32 %v299, %v388
      %390 = vmatmul.bf16.gmra.mxu0 %v355
      %v391 = vpop.f32.mrf.mxu0
      %v392 = vadd.f32 %v299, %v391
      %v393 = vpop.f32.mrf.mxu0
      %v394 = vadd.f32 %v299, %v393
      %395 = vmatmul.bf16.gmra.mxu0 %v358
      %v396 = vpop.f32.mrf.mxu0
      %v397 = vadd.f32 %v299, %v396
      %v398 = vpop.f32.mrf.mxu0
      %v399 = vadd.f32 %v299, %v398
      %400 = vmatmul.bf16.gmra.mxu0 %v361
      %v401 = vpop.f32.mrf.mxu0
      %v402 = vadd.f32 %v299, %v401
      %v403 = vpop.f32.mrf.mxu0
      %v404 = vadd.f32 %v299, %v403
      %405 = vmatmul.bf16.gmra.mxu0 %v364
      %v406 = vpop.f32.mrf.mxu0
      %v407 = vadd.f32 %v299, %v406
      %v408 = vpop.f32.mrf.mxu0
      %v409 = vadd.f32 %v299, %v408
      %410 = vmatmul.bf16.gmra.mxu0 %v367
      %v411 = vpop.f32.mrf.mxu0
      %v412 = vadd.f32 %v299, %v411
      %v413 = vpop.f32.mrf.mxu0
      %v414 = vadd.f32 %v299, %v413
      %415 = vmatmul.bf16.gmra.mxu0 %v370
      %v416 = vpop.f32.mrf.mxu0
      %v417 = vadd.f32 %v299, %v416
      %v418 = vpop.f32.mrf.mxu0
      %v419 = vadd.f32 %v299, %v418
      %420 = vdwg.mxu0
      %vm421 = vcmp.gt.f32.partialorder %v382, 0.0
      %vm422 = vcmp.gt.f32.partialorder %v384, 0.0
      %vm423 = vcmp.gt.f32.partialorder %v387, 0.0
      %vm424 = vcmp.gt.f32.partialorder %v389, 0.0
      %vm425 = vcmp.gt.f32.partialorder %v392, 0.0
      %vm426 = vcmp.gt.f32.partialorder %v394, 0.0
      %vm427 = vcmp.gt.f32.partialorder %v397, 0.0
      %vm428 = vcmp.gt.f32.partialorder %v399, 0.0
      %vm429 = vcmp.gt.f32.partialorder %v402, 0.0
      %vm430 = vcmp.gt.f32.partialorder %v404, 0.0
      %vm431 = vcmp.gt.f32.partialorder %v407, 0.0
      %vm432 = vcmp.gt.f32.partialorder %v409, 0.0
      %vm433 = vcmp.gt.f32.partialorder %v412, 0.0
      %vm434 = vcmp.gt.f32.partialorder %v414, 0.0
      %vm435 = vcmp.gt.f32.partialorder %v417, 0.0
      %vm436 = vcmp.gt.f32.partialorder %v419, 0.0
      %v437 = vmin.f32 %v382, 0.0
      %v438 = vmin.f32 %v384, 0.0
      %v439 = vmin.f32 %v387, 0.0
      %v440 = vmin.f32 %v389, 0.0
      %v441 = vmin.f32 %v392, 0.0
      %v442 = vmin.f32 %v394, 0.0
      %v443 = vmin.f32 %v397, 0.0
      %v444 = vmin.f32 %v399, 0.0
      %v445 = vmin.f32 %v402, 0.0
      %v446 = vmin.f32 %v404, 0.0
      %v447 = vmin.f32 %v407, 0.0
      %v448 = vmin.f32 %v409, 0.0
      %v449 = vmin.f32 %v412, 0.0
      %v450 = vmin.f32 %v414, 0.0
      %v451 = vmin.f32 %v417, 0.0
      %v452 = vmin.f32 %v419, 0.0
      %v453 = vmul.f32 %v437, 1.442695
      %v454 = vpow.pop %v453
      %v455 = vmul.f32 %v438, 1.442695
      %v456 = vpow.pop %v455
      %v457 = vmul.f32 %v439, 1.442695
      %v458 = vpow.pop %v457
      %v459 = vmul.f32 %v440, 1.442695
      %v460 = vpow.pop %v459
      %v461 = vmul.f32 %v441, 1.442695
      %v462 = vpow.pop %v461
      %v463 = vmul.f32 %v442, 1.442695
      %v464 = vpow.pop %v463
      %v465 = vmul.f32 %v443, 1.442695
      %v466 = vpow.pop %v465
      %v467 = vmul.f32 %v444, 1.442695
      %v468 = vpow.pop %v467
      %v469 = vmul.f32 %v445, 1.442695
      %v470 = vpow.pop %v469
      %v471 = vmul.f32 %v446, 1.442695
      %v472 = vpow.pop %v471
      %v473 = vmul.f32 %v447, 1.442695
      %v474 = vpow.pop %v473
      %v475 = vmul.f32 %v448, 1.442695
      %v476 = vpow.pop %v475
      %v477 = vmul.f32 %v449, 1.442695
      %v478 = vpow.pop %v477
      %v479 = vmul.f32 %v450, 1.442695
      %v480 = vpow.pop %v479
      %v481 = vmul.f32 %v451, 1.442695
      %v482 = vpow.pop %v481
      %v483 = vmul.f32 %v452, 1.442695
      %v484 = vpow.pop %v483
      %v485 = vsub.f32 %v454, 1.0
      %v486 = vsub.f32 %v456, 1.0
      %v487 = vsub.f32 %v458, 1.0
      %v488 = vsub.f32 %v460, 1.0
      %v489 = vsub.f32 %v462, 1.0
      %v490 = vsub.f32 %v464, 1.0
      %v491 = vsub.f32 %v466, 1.0
      %v492 = vsub.f32 %v468, 1.0
      %v493 = vsub.f32 %v470, 1.0
      %v494 = vsub.f32 %v472, 1.0
      %v495 = vsub.f32 %v474, 1.0
      %v496 = vsub.f32 %v476, 1.0
      %v497 = vsub.f32 %v478, 1.0
      %v498 = vsub.f32 %v480, 1.0
      %v499 = vsub.f32 %v482, 1.0
      %v500 = vsub.f32 %v484, 1.0
      %v501 = vsel %vm421, %v382, %v485
      %v502 = vsel %vm422, %v384, %v486
      %v503 = vsel %vm423, %v387, %v487
      %v504 = vsel %vm424, %v389, %v488
      %v505 = vsel %vm425, %v392, %v489
      %v506 = vsel %vm426, %v394, %v490
      %v507 = vsel %vm427, %v397, %v491
      %v508 = vsel %vm428, %v399, %v492
      %v509 = vsel %vm429, %v402, %v493
      %v510 = vsel %vm430, %v404, %v494
      %v511 = vsel %vm431, %v407, %v495
      %v512 = vsel %vm432, %v409, %v496
      %v513 = vsel %vm433, %v412, %v497
      %v514 = vsel %vm434, %v414, %v498
      %v515 = vsel %vm435, %v417, %v499
      %v516 = vsel %vm436, %v419, %v500
      %v517 = vpack.c.bf16 %v502, %v501
      %v518 = vpack.c.bf16 %v504, %v503
      %v519 = vpack.c.bf16 %v506, %v505
      %v520 = vpack.c.bf16 %v508, %v507
      %v521 = vpack.c.bf16 %v510, %v509
      %v522 = vpack.c.bf16 %v512, %v511
      %v523 = vpack.c.bf16 %v514, %v513
      %v524 = vpack.c.bf16 %v516, %v515
      %v525 = vld [vmem:[%s3] sm:$0xf]
      %v526 = vld [vmem:[%s3 + $0x4] sm:$0xf]
      %v527 = vld [vmem:[%s3 + $0x8] sm:$0xf]
      %v528 = vld [vmem:[%s3 + $0xc] sm:$0xf]
      %v529 = vld [vmem:[%s4] sm:$0x1]
      %v531 = vperm.slane %v529, 0
      %v537 = vunpack.c.l.b16 %v525
      %v538 = vunpack.c.l.b16 %v526
      %v539 = vunpack.c.l.b16 %v527
      %v540 = vunpack.c.l.b16 %v528
      %v541 = vpack.c.b16 %v538, %v537
      %v542 = vpack.c.b16 %v540, %v539
      %vm545 = vcmask 261120
      %v547 = vsel %vm545, %v517, 0
      %v550 = vsel %vm545, %v518, 0
      %v553 = vsel %vm545, %v519, 0
      %v556 = vsel %vm545, %v520, 0
      %v559 = vsel %vm545, %v521, 0
      %v562 = vsel %vm545, %v522, 0
      %v565 = vsel %vm545, %v523, 0
      %v568 = vsel %vm545, %v524, 0
      %570 = vmatpush.bf16.msra.mxu0 0
      %571 = vmatpush.bf16.msra.mxu0 0
      %572 = vmatpush.bf16.msra.mxu0 0
      %573 = vmatpush.bf16.msra.mxu0 0
      %574 = vmatpush.bf16.msra.mxu0 0
      %575 = vmatpush.bf16.msra.mxu0 0
      %576 = vmatpush.bf16.msra.mxu0 %v542
      %577 = vmatpush.bf16.msra.mxu0 %v541
      %578 = vmatmul.bf16.gmra.mxu0 %v547
      %v579 = vpop.f32.mrf.mxu0
      %v580 = vadd.f32 %v531, %v579
      %v581 = vpop.f32.mrf.mxu0
      %v582 = vadd.f32 %v531, %v581
      %583 = vmatmul.bf16.gmra.mxu0 %v550
      %v584 = vpop.f32.mrf.mxu0
      %v585 = vadd.f32 %v531, %v584
      %v586 = vpop.f32.mrf.mxu0
      %v587 = vadd.f32 %v531, %v586
      %588 = vmatmul.bf16.gmra.mxu0 %v553
      %v589 = vpop.f32.mrf.mxu0
      %v590 = vadd.f32 %v531, %v589
      %v591 = vpop.f32.mrf.mxu0
      %v592 = vadd.f32 %v531, %v591
      %593 = vmatmul.bf16.gmra.mxu0 %v556
      %v594 = vpop.f32.mrf.mxu0
      %v595 = vadd.f32 %v531, %v594
      %v596 = vpop.f32.mrf.mxu0
      %v597 = vadd.f32 %v531, %v596
      %598 = vmatmul.bf16.gmra.mxu0 %v559
      %v599 = vpop.f32.mrf.mxu0
      %v600 = vadd.f32 %v531, %v599
      %v601 = vpop.f32.mrf.mxu0
      %v602 = vadd.f32 %v531, %v601
      %603 = vmatmul.bf16.gmra.mxu0 %v562
      %v604 = vpop.f32.mrf.mxu0
      %v605 = vadd.f32 %v531, %v604
      %v606 = vpop.f32.mrf.mxu0
      %v607 = vadd.f32 %v531, %v606
      %608 = vmatmul.bf16.gmra.mxu0 %v565
      %v609 = vpop.f32.mrf.mxu0
      %v610 = vadd.f32 %v531, %v609
      %v611 = vpop.f32.mrf.mxu0
      %v612 = vadd.f32 %v531, %v611
      %613 = vmatmul.bf16.gmra.mxu0 %v568
      %v614 = vpop.f32.mrf.mxu0
      %v615 = vadd.f32 %v531, %v614
      %v616 = vpop.f32.mrf.mxu0
      %v617 = vadd.f32 %v531, %v616
      %618 = vdwg.mxu0
      %vm619 = vcmp.gt.f32.partialorder %v580, 0.0
      %vm620 = vcmp.gt.f32.partialorder %v582, 0.0
      %vm621 = vcmp.gt.f32.partialorder %v585, 0.0
      %vm622 = vcmp.gt.f32.partialorder %v587, 0.0
      %vm623 = vcmp.gt.f32.partialorder %v590, 0.0
      %vm624 = vcmp.gt.f32.partialorder %v592, 0.0
      %vm625 = vcmp.gt.f32.partialorder %v595, 0.0
      %vm626 = vcmp.gt.f32.partialorder %v597, 0.0
      %vm627 = vcmp.gt.f32.partialorder %v600, 0.0
      %vm628 = vcmp.gt.f32.partialorder %v602, 0.0
      %vm629 = vcmp.gt.f32.partialorder %v605, 0.0
      %vm630 = vcmp.gt.f32.partialorder %v607, 0.0
      %vm631 = vcmp.gt.f32.partialorder %v610, 0.0
      %vm632 = vcmp.gt.f32.partialorder %v612, 0.0
      %vm633 = vcmp.gt.f32.partialorder %v615, 0.0
      %vm634 = vcmp.gt.f32.partialorder %v617, 0.0
      %v635 = vmin.f32 %v580, 0.0
      %v636 = vmin.f32 %v582, 0.0
      %v637 = vmin.f32 %v585, 0.0
      %v638 = vmin.f32 %v587, 0.0
      %v639 = vmin.f32 %v590, 0.0
      %v640 = vmin.f32 %v592, 0.0
      %v641 = vmin.f32 %v595, 0.0
      %v642 = vmin.f32 %v597, 0.0
      %v643 = vmin.f32 %v600, 0.0
      %v644 = vmin.f32 %v602, 0.0
      %v645 = vmin.f32 %v605, 0.0
      %v646 = vmin.f32 %v607, 0.0
      %v647 = vmin.f32 %v610, 0.0
      %v648 = vmin.f32 %v612, 0.0
      %v649 = vmin.f32 %v615, 0.0
      %v650 = vmin.f32 %v617, 0.0
      %v651 = vmul.f32 %v635, 1.442695
      %v652 = vpow.pop %v651
      %v653 = vmul.f32 %v636, 1.442695
      %v654 = vpow.pop %v653
      %v655 = vmul.f32 %v637, 1.442695
      %v656 = vpow.pop %v655
      %v657 = vmul.f32 %v638, 1.442695
      %v658 = vpow.pop %v657
      %v659 = vmul.f32 %v639, 1.442695
      %v660 = vpow.pop %v659
      %v661 = vmul.f32 %v640, 1.442695
      %v662 = vpow.pop %v661
      %v663 = vmul.f32 %v641, 1.442695
      %v664 = vpow.pop %v663
      %v665 = vmul.f32 %v642, 1.442695
      %v666 = vpow.pop %v665
      %v667 = vmul.f32 %v643, 1.442695
      %v668 = vpow.pop %v667
      %v669 = vmul.f32 %v644, 1.442695
      %v670 = vpow.pop %v669
      %v671 = vmul.f32 %v645, 1.442695
      %v672 = vpow.pop %v671
      %v673 = vmul.f32 %v646, 1.442695
      %v674 = vpow.pop %v673
      %v675 = vmul.f32 %v647, 1.442695
      %v676 = vpow.pop %v675
      %v677 = vmul.f32 %v648, 1.442695
      %v678 = vpow.pop %v677
      %v679 = vmul.f32 %v649, 1.442695
      %v680 = vpow.pop %v679
      %v681 = vmul.f32 %v650, 1.442695
      %v682 = vpow.pop %v681
      %v683 = vsub.f32 %v652, 1.0
      %v684 = vsub.f32 %v654, 1.0
      %v685 = vsub.f32 %v656, 1.0
      %v686 = vsub.f32 %v658, 1.0
      %v687 = vsub.f32 %v660, 1.0
      %v688 = vsub.f32 %v662, 1.0
      %v689 = vsub.f32 %v664, 1.0
      %v690 = vsub.f32 %v666, 1.0
      %v691 = vsub.f32 %v668, 1.0
      %v692 = vsub.f32 %v670, 1.0
      %v693 = vsub.f32 %v672, 1.0
      %v694 = vsub.f32 %v674, 1.0
      %v695 = vsub.f32 %v676, 1.0
      %v696 = vsub.f32 %v678, 1.0
      %v697 = vsub.f32 %v680, 1.0
      %v698 = vsub.f32 %v682, 1.0
      %v699 = vsel %vm619, %v580, %v683
      %v700 = vsel %vm620, %v582, %v684
      %v701 = vsel %vm621, %v585, %v685
      %v702 = vsel %vm622, %v587, %v686
      %v703 = vsel %vm623, %v590, %v687
      %v704 = vsel %vm624, %v592, %v688
      %v705 = vsel %vm625, %v595, %v689
      %v706 = vsel %vm626, %v597, %v690
      %v707 = vsel %vm627, %v600, %v691
      %v708 = vsel %vm628, %v602, %v692
      %v709 = vsel %vm629, %v605, %v693
      %v710 = vsel %vm630, %v607, %v694
      %v711 = vsel %vm631, %v610, %v695
      %v712 = vsel %vm632, %v612, %v696
      %v713 = vsel %vm633, %v615, %v697
      %v714 = vsel %vm634, %v617, %v698
      %v715 = vld [vmem:[%s5] sm:$0x1]
      %v717 = vperm.slane %v715, 0
      %v719 = vmul.f32 %v699, %v717
      %v720 = vmul.f32 %v700, %v717
      %v721 = vmul.f32 %v701, %v717
      %v722 = vmul.f32 %v702, %v717
      %v723 = vmul.f32 %v703, %v717
      %v724 = vmul.f32 %v704, %v717
      %v725 = vmul.f32 %v705, %v717
      %v726 = vmul.f32 %v706, %v717
      %v727 = vmul.f32 %v707, %v717
      %v728 = vmul.f32 %v708, %v717
      %v729 = vmul.f32 %v709, %v717
      %v730 = vmul.f32 %v710, %v717
      %v731 = vmul.f32 %v711, %v717
      %v732 = vmul.f32 %v712, %v717
      %v733 = vmul.f32 %v713, %v717
      %v734 = vmul.f32 %v714, %v717
      %735 = vxpose.xlu0.b32.start [1/16] %v719, 128
      %736 = vxpose.xlu0.b32.cont [2/16] %v720, 128
      %737 = vxpose.xlu0.b32.cont [3/16] %v721, 128
      %738 = vxpose.xlu0.b32.cont [4/16] %v722, 128
      %739 = vxpose.xlu0.b32.cont [5/16] %v723, 128
      %740 = vxpose.xlu0.b32.cont [6/16] %v724, 128
      %741 = vxpose.xlu0.b32.cont [7/16] %v725, 128
      %742 = vxpose.xlu0.b32.cont [8/16] %v726, 128
      %743 = vxpose.xlu0.b32.cont [9/16] %v727, 128
      %744 = vxpose.xlu0.b32.cont [10/16] %v728, 128
      %745 = vxpose.xlu0.b32.cont [11/16] %v729, 128
      %746 = vxpose.xlu0.b32.cont [12/16] %v730, 128
      %747 = vxpose.xlu0.b32.cont [13/16] %v731, 128
      %748 = vxpose.xlu0.b32.cont [14/16] %v732, 128
      %749 = vxpose.xlu0.b32.cont [15/16] %v733, 128
      %750 = vxpose.xlu0.b32.end [16/16] %v734, 128
      %v751 = vpop.trf.xlu0
      %v752 = vpop.trf.xlu0
      %v753 = vpop.trf.xlu0
      %v754 = vpop.trf.xlu0
      %v755 = vpop.trf.xlu0
      %v756 = vpop.trf.xlu0
      %v757 = vpop.trf.xlu0
      %v758 = vpop.trf.xlu0
      %v759 = vpop.trf.xlu0
      %v760 = vpop.trf.xlu0
      %v761 = vpop.trf.xlu0
      %v762 = vpop.trf.xlu0
      %v763 = vpop.trf.xlu0
      %v764 = vpop.trf.xlu0
      %v765 = vpop.trf.xlu0
      %v766 = vpop.trf.xlu0
      %v767 = vadd.f32 %v751, %v752
      %v768 = vadd.f32 %v767, %v753
      %v769 = vadd.f32 %v768, %v754
      %v770 = vrot.slane %v769, 4
      %v771 = vadd.f32 %v769, %v770
      %v772 = vrot.slane %v771, 2
      %v773 = vadd.f32 %v771, %v772
      %v774 = vrot.slane %v773, 1
      %v775 = vadd.f32 %v773, %v774
      %s776 = sld [smem:[#allocation2]]
      %v777 = vstv %s776
      %v778 = vadd.f32 %v775, %v777
      %779 = vst [vmem:[%s277] sm:$0x1] %v778
      %p780 = scmp.lt.s32.totalorder %s19, 1
      %s781 = scalar_select %p780, %s19, 1
      %s782 = scalar_lea.vmem %s7, %s781
      // Predicated region
      $region49: #{value_network_forward.1} parent=47 // pred_check
        %p783 = pneg %p189
      $region50: #{value_network_forward.1} parent=47 // pred_check_branch
        %785 = sbr.rel (%p783) target = $region52
      $region51: #{value_network_forward.1} parent=47 // pred_region
        _
      $region52: #{value_network_forward.1} parent=47 // pred_fallthru
        _
    $region48: #{value_network_forward.1} parent=5 // pred_fallthru
      _
    %p786 = scmp.le.s32.totalorder 2, %s14
    // Predicated region
    $region53: #{value_network_forward.1} parent=5 // pred_check
      %p787 = pneg %p786
    $region54: #{value_network_forward.1} parent=5 // pred_check_branch
      %789 = sbr.rel (%p787) target = $region56
    $region55: #{value_network_forward.1} parent=5 // pred_region
      %s790 = ssub.s32 %s14, 2
      // Predicated region
      $region57: #{value_network_forward.1} parent=55 // pred_check
        %p791 = pneg %p195
      $region58: #{value_network_forward.1} parent=55 // pred_check_branch
        %793 = sbr.rel (%p791) target = $region60
      $region59: #{value_network_forward.1} parent=55 // pred_region
        %p794 = scmp.lt.s32.totalorder %s20, 1
        %s795 = scalar_select %p794, %s20, 1
        %s796 = scalar_lea.vmem %s7, %s795
      $region60: #{value_network_forward.1} parent=55 // pred_fallthru
        _
    $region56: #{value_network_forward.1} parent=5 // pred_fallthru
      _
  $region6: #{value_network_forward.1} parent=0 // loop_footer
    %s18 = sadd.s32 1, %s14
  $region7: #{value_network_forward.1} parent=0 // loop_footer_branch
    %13 = sbr.rel target = $region3
  $region8: #{value_network_forward.1} parent=0 // loop_exit
    _

</llo_original>
